<compile_context>
chip_gen: v7x
topology: tpu7x:2x2x1
jax: 0.10.0
libtpu: 0.0.40
codegen_flags: <defaults>
</compile_context>

<pallas_src>
import jax
import jax.numpy as jnp
from jax import lax
from jax.experimental import pallas as pl
from jax.experimental.pallas import tpu as pltpu

_LANES = 128


def _round_up(x, m):
    return ((x + m - 1) // m) * m


def _make_rmsd_kernel(valid_rows, block_rows, chunk_rows, needs_mask):
    """Kernel producing one (8, 128) f32 partial sum of ((o-l)/l)^2 per split."""
    n_chunks = block_rows // chunk_rows
    groups = chunk_rows // 8

    def kernel(o_ref, l_ref, out_ref):
        i = pl.program_id(0)            # split axis ("parallel"; 2 TCs on v7x)
        k = pl.program_id(1)            # reduction axis ("arbitrary")
        nk = pl.num_programs(1)
        tile_row0 = (i * nk + k) * block_rows   # logical first row of this tile

        def chunk_partial(r0, acc, masked, row_iota):
            o = o_ref[pl.ds(r0, chunk_rows), :].astype(jnp.float32)
            l = l_ref[pl.ds(r0, chunk_rows), :].astype(jnp.float32)
            # (o - l) / l : EUP vrcp + one Newton-Raphson step (VPU slack).
            r = pl.reciprocal(l, approx=True)
            r = r * (2.0 - l * r)
            d = (o - l) * r
            sq = d * d
            if masked:
                g_row = (tile_row0 + r0) + row_iota
                sq = jnp.where(g_row < valid_rows, sq, 0.0)
            # Sublane-group reduce: pure VPU vreg adds, no XLU cross-lane work.
            return acc + jnp.sum(sq.reshape(groups, 8, _LANES), axis=0)

        def tile_partial(masked):
            row_iota = (
                lax.broadcasted_iota(jnp.int32, (chunk_rows, _LANES), 0)
                if masked else None
            )
            init = jnp.zeros((8, _LANES), jnp.float32)
            if n_chunks == 1:
                return chunk_partial(0, init, masked, row_iota)
            return lax.fori_loop(
                0, n_chunks,
                lambda c, a: chunk_partial(
                    pl.multiple_of(c * chunk_rows, chunk_rows), a, masked, row_iota),
                init,
                unroll=min(8, n_chunks),
            )

        def accumulate(masked):
            val = tile_partial(masked)

            @pl.when(k == 0)
            def _():
                out_ref[...] = val

            @pl.when(k > 0)
            def _():
                out_ref[...] = out_ref[...] + val

        if needs_mask:
            # Only boundary (or duplicated overhang) tiles pay for masking.
            is_partial = (tile_row0 + block_rows) > valid_rows

            @pl.when(is_partial)
            def _():
                accumulate(True)

            @pl.when(jnp.logical_not(is_partial))
            def _():
                accumulate(False)
        else:
            accumulate(False)

    return kernel


def rmsd(outputs, labels, *, block_rows=8192, n_split=2):
    """sqrt(mean(((outputs - labels) / labels)^2)) accumulated in float32."""
    assert outputs.shape == labels.shape
    total_n = int(outputs.size)
    assert total_n > 0

    itemsize = min(outputs.dtype.itemsize, labels.dtype.itemsize)
    granule = {4: 8, 2: 16, 1: 32}.get(itemsize, 8)   # sublane packing per dtype

    n128 = _round_up(total_n, _LANES)
    rows = n128 // _LANES

    # Native-dtype, (mostly) zero-copy lane-dense view.
    flat_o = outputs.reshape(-1)
    flat_l = labels.reshape(-1)
    if n128 != total_n:
        pad = n128 - total_n
        # Pad value 1.0 -> ((1-1)/1)^2 = 0, so the tail never needs masking.
        flat_o = jnp.pad(flat_o, (0, pad), constant_values=1)
        flat_l = jnp.pad(flat_l, (0, pad), constant_values=1)
    o2 = flat_o.reshape(rows, _LANES)
    l2 = flat_l.reshape(rows, _LANES)

    # ---- tile-size selection ------------------------------------------------
    # Cap the double-buffered working set (2 inputs x 2 buffers) at ~24 MiB so
    # it fits v7x's 64 MiB VMEM with headroom; vmem_limit below covers v5e.
    bytes_per_row = _LANES * (outputs.dtype.itemsize + labels.dtype.itemsize)
    max_rows = max(granule, ((24 * 2**20) // (2 * bytes_per_row)) // 64 * 64)
    rows_g = _round_up(rows, granule)
    if rows_g <= 64:
        block_rows = rows_g
        chunk_rows = rows_g
    else:
        chunk_rows = 64                 # multiple of 32: safe for f32/bf16/int8 packing
        block_rows = max(64, min(int(block_rows), max_rows, _round_up(rows, 64)))
        block_rows = _round_up(block_rows, 64)
    n_tiles = pl.cdiv(rows, block_rows)

    # Two-way split of the row range: sharded across the 2 TensorCores on v7x
    # via the "parallel" leading axis; sequential (and harmless) on v5e/v6e.
    n_split = int(n_split) if n_tiles >= 2 else 1
    n_split = max(1, min(n_split, n_tiles))
    steps = pl.cdiv(n_tiles, n_split)

    covered_rows = n_split * steps * block_rows
    needs_mask = covered_rows > rows

    kernel = _make_rmsd_kernel(rows, block_rows, chunk_rows, needs_mask)

    last_tile = n_tiles - 1

    def in_index(i, k):
        # Clamp so no tile is ever fully out of bounds; the duplicated overhang
        # tile is zeroed by the in-kernel row mask.
        return (jnp.minimum(i * steps + k, last_tile), 0)

    cost = pl.CostEstimate(
        flops=8 * total_n,
        transcendentals=total_n,                      # one reciprocal / element
        bytes_accessed=int(o2.size * o2.dtype.itemsize
                           + l2.size * l2.dtype.itemsize
                           + n_split * 8 * _LANES * 4),
    )

    partials = pl.pallas_call(
        kernel,
        out_shape=jax.ShapeDtypeStruct((n_split * 8, _LANES), jnp.float32),
        grid_spec=pltpu.PrefetchScalarGridSpec(
            num_scalar_prefetch=0,
            grid=(n_split, steps),
            in_specs=[
                pl.BlockSpec((block_rows, _LANES), in_index),
                pl.BlockSpec((block_rows, _LANES), in_index),
            ],
            out_specs=pl.BlockSpec((8, _LANES), lambda i, k: (i, 0)),
        ),
        compiler_params=pltpu.CompilerParams(
            dimension_semantics=("parallel", "arbitrary"),
            vmem_limit_bytes=32 * 1024 * 1024,
        ),
        cost_estimate=cost,
    )(o2, l2)

    # Tiny finalize (sum of <=2*8*128 f32 values) + sqrt(mean) outside the kernel.
    return jnp.sqrt(jnp.sum(partials) / jnp.float32(total_n))


if __name__ == "__main__":
    key = jax.random.PRNGKey(0)
    k1, k2, k3, k4, k5, k6 = jax.random.split(key, 6)

    # Small NCHW pair (the typical input of this loss).
    shape = (2, 4, 16, 16)
    labels = jax.random.uniform(k1, shape, jnp.float32, minval=0.5, maxval=2.0)
    outputs = labels + 0.1 * jax.random.normal(k2, shape, jnp.float32)

    result = jax.block_until_ready(rmsd(outputs, labels))
    ref = jnp.sqrt(jnp.mean(jnp.square((outputs - labels) / labels), dtype=jnp.float32))
    assert jnp.allclose(result, ref, rtol=1e-5, atol=1e-6), (result, ref)

    # Non-128-divisible size with an odd tile count: exercises the masked
    # boundary tile, the 2-way split, and the clamped duplicate overhang tile.
    big_shape = (3, 5, 33, 37)  # 18315 elements
    big_labels = jax.random.uniform(k3, big_shape, jnp.float32, minval=0.5, maxval=2.0)
    big_outputs = big_labels + 0.05 * jax.random.normal(k4, big_shape, jnp.float32)
    big_result = jax.block_until_ready(rmsd(big_outputs, big_labels, block_rows=64))
    big_ref = jnp.sqrt(
        jnp.mean(jnp.square((big_outputs - big_labels) / big_labels), dtype=jnp.float32)
    )
    assert jnp.allclose(big_result, big_ref, rtol=1e-5, atol=1e-6), (big_result, big_ref)

    # Aligned multi-chunk case: exercises the streaming fori_loop path.
    mid_shape = (3, 8, 32, 32)  # 24576 elements -> 192 rows, 3 chunks of 64
    mid_labels = jax.random.uniform(k5, mid_shape, jnp.float32, minval=0.5, maxval=2.0)
    mid_outputs = mid_labels + 0.05 * jax.random.normal(k6, mid_shape, jnp.float32)
    mid_result = jax.block_until_ready(rmsd(mid_outputs, mid_labels))
    mid_ref = jnp.sqrt(
        jnp.mean(jnp.square((mid_outputs - mid_labels) / mid_labels), dtype=jnp.float32)
    )
    assert jnp.allclose(mid_result, mid_ref, rtol=1e-5, atol=1e-6), (mid_result, mid_ref)

    print("KERNEL_OK")
</pallas_src>

<mosaic_0001>
module attributes {stable_mosaic.version = 11 : i64} {
  func.func @kernel(%arg0: i32, %arg1: i32, %arg2: memref<16x128xf32, #tpu.memory_space<vmem>>, %arg3: memref<16x128xf32, #tpu.memory_space<vmem>>, %arg4: memref<8x128xf32, #tpu.memory_space<vmem>>) attributes {dimension_semantics = [#tpu.dimension_semantics<parallel>, #tpu.dimension_semantics<arbitrary>], iteration_bounds = array<i64: 1, 1>, scalar_prefetch = 0 : i64, scratch_operands = 0 : i64, tpu.core_type = #tpu.core_type<tc>, window_params = [{transform_indices = @transform_0, window_bounds = array<i64: 16, 128>}, {transform_indices = @transform_1, window_bounds = array<i64: 16, 128>}, {transform_indices = @transform_2, window_bounds = array<i64: 8, 128>}]} {
    %cst = arith.constant 0.000000e+00 : f32
    %0 = vector.broadcast %cst : f32 to vector<8x128xf32>
    %c0 = arith.constant 0 : index
    %c0_0 = arith.constant 0 : index
    %1 = vector.load %arg2[%c0, %c0_0] : memref<16x128xf32, #tpu.memory_space<vmem>>, vector<16x128xf32>
    %c0_1 = arith.constant 0 : index
    %c0_2 = arith.constant 0 : index
    %2 = vector.load %arg3[%c0_1, %c0_2] : memref<16x128xf32, #tpu.memory_space<vmem>>, vector<16x128xf32>
    %3 = tpu.reciprocal %2 {approx = true} : vector<16x128xf32> -> vector<16x128xf32>
    %4 = arith.mulf %2, %3 : vector<16x128xf32>
    %cst_3 = arith.constant 2.000000e+00 : f32
    %5 = vector.broadcast %cst_3 : f32 to vector<16x128xf32>
    %6 = arith.subf %5, %4 : vector<16x128xf32>
    %7 = arith.mulf %3, %6 : vector<16x128xf32>
    %8 = arith.subf %1, %2 : vector<16x128xf32>
    %9 = arith.mulf %8, %7 : vector<16x128xf32>
    %10 = arith.mulf %9, %9 : vector<16x128xf32>
    %11 = vector.shape_cast %10 : vector<16x128xf32> to vector<2x8x128xf32>
    %cst_4 = arith.constant dense<0.000000e+00> : vector<8x128xf32>
    %12 = vector.multi_reduction <add>, %11, %cst_4 [0] : vector<2x8x128xf32> to vector<8x128xf32>
    %13 = arith.addf %0, %12 : vector<8x128xf32>
    %c0_i32 = arith.constant 0 : i32
    %14 = arith.cmpi eq, %arg1, %c0_i32 : i32
    %15 = arith.extui %14 : i1 to i32
    %c0_i32_5 = arith.constant 0 : i32
    %16 = arith.cmpi ne, %15, %c0_i32_5 : i32
    scf.if %16 {
      %c0_8 = arith.constant 0 : index
      %c0_9 = arith.constant 0 : index
      %20 = vector.load %arg4[%c0_8, %c0_9] : memref<8x128xf32, #tpu.memory_space<vmem>>, vector<8x128xf32>
      tpu.vector_store %arg4[%c0_8, %c0_9], %13 {strides = array<i32>} : memref<8x128xf32, #tpu.memory_space<vmem>>, vector<8x128xf32>,
    } else {
    }
    %c0_i32_6 = arith.constant 0 : i32
    %17 = arith.cmpi sgt, %arg1, %c0_i32_6 : i32
    %18 = arith.extui %17 : i1 to i32
    %c0_i32_7 = arith.constant 0 : i32
    %19 = arith.cmpi ne, %18, %c0_i32_7 : i32
    scf.if %19 {
      %c0_8 = arith.constant 0 : index
      %c0_9 = arith.constant 0 : index
      %20 = vector.load %arg4[%c0_8, %c0_9] : memref<8x128xf32, #tpu.memory_space<vmem>>, vector<8x128xf32>
      %21 = arith.addf %20, %13 : vector<8x128xf32>
      %c0_10 = arith.constant 0 : index
      %c0_11 = arith.constant 0 : index
      %22 = vector.load %arg4[%c0_10, %c0_11] : memref<8x128xf32, #tpu.memory_space<vmem>>, vector<8x128xf32>
      tpu.vector_store %arg4[%c0_10, %c0_11], %21 {strides = array<i32>} : memref<8x128xf32, #tpu.memory_space<vmem>>, vector<8x128xf32>,
    } else {
    }
    return
  }
  func.func @transform_0(%arg0: i32, %arg1: i32) -> (i32, i32) {
    %c1_i32 = arith.constant 1 : i32
    %0 = arith.muli %arg0, %c1_i32 : i32
    %1 = arith.addi %0, %arg1 : i32
    %c0_i32 = arith.constant 0 : i32
    %2 = arith.minsi %1, %c0_i32 : i32
    %c0_i32_0 = arith.constant 0 : i32
    %c0_i32_1 = arith.constant 0 : i32
    return %2, %c0_i32_0 : i32, i32
  }
  func.func @transform_1(%arg0: i32, %arg1: i32) -> (i32, i32) {
    %c1_i32 = arith.constant 1 : i32
    %0 = arith.muli %arg0, %c1_i32 : i32
    %1 = arith.addi %0, %arg1 : i32
    %c0_i32 = arith.constant 0 : i32
    %2 = arith.minsi %1, %c0_i32 : i32
    %c0_i32_0 = arith.constant 0 : i32
    %c0_i32_1 = arith.constant 0 : i32
    return %2, %c0_i32_0 : i32, i32
  }
  func.func @transform_2(%arg0: i32, %arg1: i32) -> (i32, i32) {
    %c0_i32 = arith.constant 0 : i32
    %c0_i32_0 = arith.constant 0 : i32
    return %arg0, %c0_i32 : i32, i32
  }
}

</mosaic_0001>

<llo_original>
// kernel: tpu_custom_call.1
$region0: #{tpu_custom_call.1}
  #allocation0 [shape = 'u32[]', space=smem, size = 0x4, offset = 0x4, fixed_abs, tag = 'smem constant byte address 0x4 - core index']
  #allocation1 [shape = 'u32[144,128]{1,0:T(1,128)}', space=vmem, size = 0x12000, scoped, tag = 'internal scratch']
  %s0 = inlined_call_operand.hbm [shape: f32[16,128], index: 0, kind: input, shape index: {}]
  %s1 = inlined_call_operand.hbm [shape: f32[16,128], index: 1, kind: input, shape index: {}]
  %s2 = inlined_call_operand.hbm [shape: f32[8,128], index: 2, kind: output, shape index: {}]
  %s3 = sld [smem:[#allocation0]]
  $region34: #{tpu_custom_call.1} parent=0
    _
  %s5 = ssub.s32 1, %s3
  %s6 = scalar_select 0, %s5, %s3
  $region1: #{tpu_custom_call.1} parent=0
    #allocation2 [shape = 'u8[8192]{0}', space=vmem, size = 0x2000, scoped, tag = 'input window, operand 0, single buffered']
    #allocation3 [shape = 's32[1]{0}', space=sflag, size = 0x4, scoped, tag = 'scoped memory for tpu_custom_call.1']
    #allocation4 [shape = 's32[1]{0}', space=sflag, size = 0x4, scoped, tag = 'scoped memory for tpu_custom_call.1']
    #allocation5 [shape = 'u8[8192]{0}', space=vmem, size = 0x2000, scoped, tag = 'input window, operand 1, single buffered']
    #allocation6 [shape = 's32[1]{0}', space=sflag, size = 0x4, scoped, tag = 'scoped memory for tpu_custom_call.1']
    #allocation7 [shape = 'u8[4096]{0}', space=vmem, size = 0x1000, scoped, tag = 'output window, operand 0, single buffered']
    %7 = vsyncpa [#allocation3], 0
    %8 = vsyncpa [#allocation6], 0
    %9 = vsyncpa [#allocation4], 0
    // Predicated region
    $region2: #{tpu_custom_call.1} parent=1 // pred_check
      _
    $region3: #{tpu_custom_call.1} parent=1 // pred_check_branch
      %11 = sbr.rel (0) target = $region5
    $region4: #{tpu_custom_call.1} parent=1 // pred_region
      %s12 = sadd.s32 0, 0
      %p13 = scmp.lt.s32.totalorder %s12, 0
      %s14 = scalar_select %p13, %s12, 0
      %s15 = smul.u32 2, %s14
      %s17 = ssub.s32 256, 256
      %18 = vsyncadd [#allocation3], %s17
      %s19 = smul.addr %s15, 128
      %s20 = scalar_lea.hbm %s0, %s19
      %s21 = sshll.u32 [#allocation2], 4
      %s22 = int_to_ptr.vmem [resolvable:$true] %s21
      %27 = dma.hbm_to_vmem [thread:$0]  %s20, 256, %s22, [#allocation3], 128, 128, 8
    $region5: #{tpu_custom_call.1} parent=1 // pred_fallthru
      _
    // Predicated region
    $region6: #{tpu_custom_call.1} parent=1 // pred_check
      _
    $region7: #{tpu_custom_call.1} parent=1 // pred_check_branch
      %29 = sbr.rel (0) target = $region9
    $region8: #{tpu_custom_call.1} parent=1 // pred_region
      %s30 = sadd.s32 0, 0
      %p31 = scmp.lt.s32.totalorder %s30, 0
      %s32 = scalar_select %p31, %s30, 0
      %s33 = smul.u32 2, %s32
      %s35 = ssub.s32 256, 256
      %36 = vsyncadd [#allocation6], %s35
      %s37 = smul.addr %s33, 128
      %s38 = scalar_lea.hbm %s1, %s37
      %s39 = sshll.u32 [#allocation5], 4
      %s40 = int_to_ptr.vmem [resolvable:$true] %s39
      %45 = dma.hbm_to_vmem [thread:$0]  %s38, 256, %s40, [#allocation6], 128, 128, 8
    $region9: #{tpu_custom_call.1} parent=1 // pred_fallthru
      _
    // Predicated region
    $region10: #{tpu_custom_call.1} parent=1 // pred_check
      _
    $region11: #{tpu_custom_call.1} parent=1 // pred_check_branch
      %47 = sbr.rel (0) target = $region13
    $region12: #{tpu_custom_call.1} parent=1 // pred_region
      %48 = dma.done [#allocation3], 256
    $region13: #{tpu_custom_call.1} parent=1 // pred_fallthru
      _
    // Predicated region
    $region14: #{tpu_custom_call.1} parent=1 // pred_check
      _
    $region15: #{tpu_custom_call.1} parent=1 // pred_check_branch
      %50 = sbr.rel (0) target = $region17
    $region16: #{tpu_custom_call.1} parent=1 // pred_region
      %51 = dma.done [#allocation6], 256
    $region17: #{tpu_custom_call.1} parent=1 // pred_fallthru
      _
    %s52 = sadd.s32 0, 0
    %p53 = scmp.lt.s32.totalorder %s52, 0
    %s54 = scalar_select %p53, %s52, 0
    %s55 = smul.u32 2, %s54
    %s56 = sadd.s32 0, 0
    %p57 = scmp.lt.s32.totalorder %s56, 0
    %s58 = scalar_select %p57, %s56, 0
    %s59 = smul.u32 2, %s58
    %v60 = vld [vmem:[#allocation2] sm:$0xff]
    %v61 = vld [vmem:[#allocation2 + $0x8] sm:$0xff]
    %v62 = vld [vmem:[#allocation5] sm:$0xff]
    %v63 = vld [vmem:[#allocation5 + $0x8] sm:$0xff]
    %v64 = vrcp.pop %v62
    %v65 = vrcp.pop %v63
    %v66 = vmul.f32 %v62, %v64
    %v67 = vmul.f32 %v63, %v65
    %v68 = vsub.f32 2.0, %v66
    %v69 = vsub.f32 2.0, %v67
    %v70 = vmul.f32 %v64, %v68
    %v71 = vmul.f32 %v65, %v69
    %v72 = vsub.f32 %v60, %v62
    %v73 = vsub.f32 %v61, %v63
    %v74 = vmul.f32 %v72, %v70
    %v75 = vmul.f32 %v73, %v71
    %v76 = vmul.f32 %v74, %v74
    %v77 = vmul.f32 %v75, %v75
    %v78 = vadd.f32 %v76, %v77
    %v79 = vadd.f32 %v78, 0.0
    %p80 = scmp.eq.s32.totalorder 0, 0
    // Predicated region
    $region18: #{tpu_custom_call.1} parent=1 // pred_check
      %p81 = pneg %p80
    $region19: #{tpu_custom_call.1} parent=1 // pred_check_branch
      %83 = sbr.rel (%p81) target = $region21
    $region20: #{tpu_custom_call.1} parent=1 // pred_region
      %84 = vst [vmem:[#allocation7] sm:$0xff] %v79
    $region21: #{tpu_custom_call.1} parent=1 // pred_fallthru
      _
    %p85 = scmp.gt.s32.totalorder 0, 0
    // Predicated region
    $region22: #{tpu_custom_call.1} parent=1 // pred_check
      %p86 = pneg %p85
    $region23: #{tpu_custom_call.1} parent=1 // pred_check_branch
      %88 = sbr.rel (%p86) target = $region25
    $region24: #{tpu_custom_call.1} parent=1 // pred_region
      %v89 = vld [vmem:[#allocation7] sm:$0xff]
      %v90 = vadd.f32 %v89, %v79
      %91 = vst [vmem:[#allocation7] sm:$0xff] %v90
    $region25: #{tpu_custom_call.1} parent=1 // pred_fallthru
      _
    // Predicated region
    $region26: #{tpu_custom_call.1} parent=1 // pred_check
      _
    $region27: #{tpu_custom_call.1} parent=1 // pred_check_branch
      %93 = sbr.rel (0) target = $region29
    $region28: #{tpu_custom_call.1} parent=1 // pred_region
      %s95 = ssub.s32 128, 128
      %96 = vsyncadd [#allocation4], %s95
      %s98 = sshll.u32 [#allocation7], 4
      %s99 = int_to_ptr.vmem [resolvable:$true] %s98
      %101 = dma.vmem_to_hbm [thread:$0]  %s99, 128, %s2, [#allocation4]
    $region29: #{tpu_custom_call.1} parent=1 // pred_fallthru
      _
    // Predicated region
    $region30: #{tpu_custom_call.1} parent=1 // pred_check
      _
    $region31: #{tpu_custom_call.1} parent=1 // pred_check_branch
      %103 = sbr.rel (0) target = $region33
    $region32: #{tpu_custom_call.1} parent=1 // pred_region
      %104 = dma.done [#allocation4], 128
    $region33: #{tpu_custom_call.1} parent=1 // pred_fallthru
      _
    %105 = vsyncpa [#allocation3], 1
    %106 = vsyncpa [#allocation6], 1
    %107 = vsyncpa [#allocation4], 1

</llo_original>
